<compile_context>
chip_gen: v5e
topology: v5e:2x2
jax: 0.10.0
libtpu: 0.0.40
codegen_flags: <defaults>
</compile_context>

<pallas_src>
import jax
import jax.numpy as jnp
from jax import lax
from jax.experimental import pallas as pl
from jax.experimental.pallas import tpu as pltpu

NUM_GROUPS = 16
EPS = 1e-6


# --------------------------------------------------------------------------------------
# generation-aware sizing
# --------------------------------------------------------------------------------------
def _vmem_capacity_bytes():
    try:
        return int(pltpu.get_tpu_info().vmem_capacity_bytes)
    except Exception:
        return 64 * 1024 * 1024  # conservative (v7x-sized) fallback


def _gen_params():
    vmem = _vmem_capacity_bytes()
    if vmem >= 100 * 1024 * 1024:            # v5e / v6e: 128 MiB physical VMEM
        return 512, 96 * 1024 * 1024
    return 256, 56 * 1024 * 1024             # v7x: 64 MiB physical VMEM


def _pick_tile(n, cap):
    for cand in (512, 256, 128, 64, 32, 16, 8):
        if cand <= cap and n % cand == 0:
            return cand
    return n


# --------------------------------------------------------------------------------------
# kernel 1: GroupNorm + fused Q / K / (V@Wp) projections, row-chunked over hw
# --------------------------------------------------------------------------------------
def _make_gn_qkv_kernel(hw, c, slab):
    n_slab = hw // slab
    unroll = n_slab <= 8

    def kernel(x_ref, gavg_ref, wq_ref, wk_ref, wvp_ref, bias_ref,
               q_ref, k_ref, vp_ref):
        # x_ref:    (1, hw, c) f32
        # gavg_ref: (c, c) f32  group-averaging matrix (1/(hw*cg) for same-group pairs)
        # wq/wk/wvp_ref: (c, c) bf16 (affine, scale and Wp already folded in)
        # bias_ref: (3, c) f32  fused biases [q, k, v@Wp+bp]
        # q/k/vp_ref: (1, hw, c) bf16 outputs

        # ---- pass 1: GroupNorm statistics via column sums (row-chunked, no big temps) ----
        def stats_body(s, carry):
            cs, cs2 = carry
            r0 = pl.multiple_of(s * slab, slab)
            xs = x_ref[0, pl.ds(r0, slab), :]                       # (slab, c) f32
            return (cs + jnp.sum(xs, axis=0, keepdims=True),
                    cs2 + jnp.sum(xs * xs, axis=0, keepdims=True))

        z = jnp.zeros((1, c), jnp.float32)
        colsum, colsumsq = lax.fori_loop(0, n_slab, stats_body, (z, z), unroll=unroll)
        # tiny (1,c)@(c,c) dot that group-reduces and broadcasts per channel (1/n baked in)
        mean_c = jnp.dot(colsum, gavg_ref[...], preferred_element_type=jnp.float32)
        ex2_c = jnp.dot(colsumsq, gavg_ref[...], preferred_element_type=jnp.float32)
        var_c = jnp.maximum(ex2_c - mean_c * mean_c, 0.0)
        rstd_c = lax.rsqrt(var_c + EPS)

        bq = bias_ref[0:1, :]
        bk = bias_ref[1:2, :]
        bvp = bias_ref[2:3, :]

        # ---- pass 2: normalize + project one slab at a time (no (hw,3c) f32 temporary;
        #      three separate N=c matmuls, each cast to bf16 straight into its output) ----
        def proj_body(s, carry):
            r0 = pl.multiple_of(s * slab, slab)
            xs = x_ref[0, pl.ds(r0, slab), :]                       # (slab, c) f32
            h_bf = ((xs - mean_c) * rstd_c).astype(jnp.bfloat16)    # affine folded in W
            q = jnp.dot(h_bf, wq_ref[...], preferred_element_type=jnp.float32) + bq
            q_ref[0, pl.ds(r0, slab), :] = q.astype(jnp.bfloat16)
            k = jnp.dot(h_bf, wk_ref[...], preferred_element_type=jnp.float32) + bk
            k_ref[0, pl.ds(r0, slab), :] = k.astype(jnp.bfloat16)
            v = jnp.dot(h_bf, wvp_ref[...], preferred_element_type=jnp.float32) + bvp
            vp_ref[0, pl.ds(r0, slab), :] = v.astype(jnp.bfloat16)
            return carry

        lax.fori_loop(0, n_slab, proj_body, 0, unroll=unroll)

    return kernel


# --------------------------------------------------------------------------------------
# kernel 2: attention + residual for one (batch, q-tile) block
# --------------------------------------------------------------------------------------
def _attn_kernel(x_ref, q_ref, k_ref, vp_ref, o_ref):
    # x_ref: (1, tq, c) f32 residual | q_ref: (1, tq, c) bf16 | k_ref/vp_ref: (1, hw, c) bf16
    q_t = q_ref[0]                                                  # (tq, c) bf16
    # NT matmul (rhs contracts on its last dim) lowers natively on the MXU — no vxpose.
    logits = lax.dot_general(q_t, k_ref[0], (((1,), (1,)), ((), ())),
                             preferred_element_type=jnp.float32)    # (tq, hw) f32
    m = jnp.max(logits, axis=-1, keepdims=True)
    p = jnp.exp(logits - m)                                         # (tq, hw) f32
    rowsum = jnp.sum(p, axis=-1, keepdims=True)                     # (tq, 1)  f32
    # deferred softmax normalization: PV first, then scale the small (tq, c) result
    proj = jnp.dot(p.astype(jnp.bfloat16), vp_ref[0],
                   preferred_element_type=jnp.float32)              # (tq, c)  f32
    # residual; proj bias is inside vp (it picks up rowsum, cancelled by the reciprocal)
    o_ref[0] = x_ref[0] + proj * pl.reciprocal(rowsum, approx=True)


# --------------------------------------------------------------------------------------
# wrappers
# --------------------------------------------------------------------------------------
def attn_block_pallas_nhwc(x_seq, params, *, q_tile=None):
    """Channels-last core: x_seq is (b, hw, c). Production callers should use this
    directly so no NCHW<->NHWC HBM transposes are paid."""
    b, hw, c = x_seq.shape
    assert c % NUM_GROUPS == 0
    cg = c // NUM_GROUPS

    q_cap, vmem_limit = _gen_params()
    if q_tile is None:
        q_tile = _pick_tile(hw, q_cap)
    assert hw % q_tile == 0
    n_qt = hw // q_tile
    slab = _pick_tile(hw, 512)

    x_seq = x_seq.astype(jnp.float32)

    # ---- fold GroupNorm affine, softmax scale and the output projection into weights ----
    gamma = params["gamma"].astype(jnp.float32)
    beta = params["beta"].astype(jnp.float32)
    # conv weight (out, in, 1, 1) -> (in, out) so the kernel can do h @ W
    wq_t = params["wq"].reshape(c, c).T.astype(jnp.float32)
    wk_t = params["wk"].reshape(c, c).T.astype(jnp.float32)
    wv_t = params["wv"].reshape(c, c).T.astype(jnp.float32)
    wp_t = params["wp"].reshape(c, c).T.astype(jnp.float32)
    scale = float(c) ** (-0.5)

    wq_f = (gamma[:, None] * wq_t) * scale                 # softmax scale folded into Q
    bq_f = (beta @ wq_t + params["bq"]) * scale
    wk_f = gamma[:, None] * wk_t
    bk_f = beta @ wk_t + params["bk"]
    wv_f = gamma[:, None] * wv_t
    bv_f = beta @ wv_t + params["bv"]
    wvp_f = wv_f @ wp_t                                    # (attn @ v) @ Wp == attn @ (v @ Wp)
    bvp_f = bv_f @ wp_t + params["bp"]                     # softmax rows sum to 1

    wq_bf = wq_f.astype(jnp.bfloat16)
    wk_bf = wk_f.astype(jnp.bfloat16)
    wvp_bf = wvp_f.astype(jnp.bfloat16)
    bias = jnp.stack([bq_f, bk_f, bvp_f], axis=0).astype(jnp.float32)   # (3, c)

    # group-averaging matrix: gavg[i, j] = 1/(hw*cg) if channels i, j share a group else 0
    group_id = jnp.arange(c, dtype=jnp.int32) // cg
    gavg = ((group_id[:, None] == group_id[None, :]).astype(jnp.float32)
            / float(hw * cg))                                            # (c, c)

    # ---- call 1: GroupNorm + fused Q/K/(V@Wp) projections, grid over batch ----
    q_bf, k_bf, vp_bf = pl.pallas_call(
        _make_gn_qkv_kernel(hw, c, slab),
        out_shape=(jax.ShapeDtypeStruct((b, hw, c), jnp.bfloat16),
                   jax.ShapeDtypeStruct((b, hw, c), jnp.bfloat16),
                   jax.ShapeDtypeStruct((b, hw, c), jnp.bfloat16)),
        grid_spec=pltpu.PrefetchScalarGridSpec(
            num_scalar_prefetch=0,
            grid=(b,),
            in_specs=[
                pl.BlockSpec((1, hw, c), lambda i: (i, 0, 0)),   # x (per-batch block)
                pl.BlockSpec((c, c), lambda i: (0, 0)),          # group-averaging matrix
                pl.BlockSpec((c, c), lambda i: (0, 0)),          # Wq (bf16, fused)
                pl.BlockSpec((c, c), lambda i: (0, 0)),          # Wk (bf16, fused)
                pl.BlockSpec((c, c), lambda i: (0, 0)),          # Wv@Wp (bf16, fused)
                pl.BlockSpec((3, c), lambda i: (0, 0)),          # fused biases
            ],
            out_specs=(
                pl.BlockSpec((1, hw, c), lambda i: (i, 0, 0)),
                pl.BlockSpec((1, hw, c), lambda i: (i, 0, 0)),
                pl.BlockSpec((1, hw, c), lambda i: (i, 0, 0)),
            ),
        ),
        compiler_params=pltpu.CompilerParams(
            dimension_semantics=("parallel",),
            vmem_limit_bytes=vmem_limit,
        ),
    )(x_seq, gavg, wq_bf, wk_bf, wvp_bf, bias)

    # ---- call 2: attention + residual, grid (batch, q-tile), both axes parallel ----
    # k/vp block indices only change with the batch axis; they fit double-buffered at
    # production shapes (~16 MiB bf16 at hw=4096,c=512) even on v7x alongside the
    # (tq,hw) softmax temporaries, so the default pipelining is kept.
    out_seq = pl.pallas_call(
        _attn_kernel,
        out_shape=jax.ShapeDtypeStruct((b, hw, c), jnp.float32),
        grid_spec=pltpu.PrefetchScalarGridSpec(
            num_scalar_prefetch=0,
            grid=(b, n_qt),
            in_specs=[
                pl.BlockSpec((1, q_tile, c), lambda i, j: (i, j, 0)),   # residual x tile
                pl.BlockSpec((1, q_tile, c), lambda i, j: (i, j, 0)),   # q tile (bf16)
                pl.BlockSpec((1, hw, c), lambda i, j: (i, 0, 0)),       # k (per batch)
                pl.BlockSpec((1, hw, c), lambda i, j: (i, 0, 0)),       # v@Wp (per batch)
            ],
            out_specs=pl.BlockSpec((1, q_tile, c), lambda i, j: (i, j, 0)),
        ),
        compiler_params=pltpu.CompilerParams(
            dimension_semantics=("parallel", "parallel"),
            vmem_limit_bytes=vmem_limit,
        ),
    )(x_seq, q_bf, k_bf, vp_bf)

    return out_seq


def attn_block_pallas(x_nchw, params, q_tile=None):
    """NCHW interface matching the PyTorch module. The two transposes below are layout
    plumbing only; keep the surrounding model channels-last and call
    attn_block_pallas_nhwc directly to avoid them."""
    b, c, h, w = x_nchw.shape
    x_seq = jnp.transpose(x_nchw, (0, 2, 3, 1)).reshape(b, h * w, c)
    out_seq = attn_block_pallas_nhwc(x_seq, params, q_tile=q_tile)
    return jnp.transpose(out_seq.reshape(b, h, w, c), (0, 3, 1, 2))


# --------------------------------------------------------------------------------------
# pure-JAX reference (matches the PyTorch forward exactly, all f32)
# --------------------------------------------------------------------------------------
def attn_block_reference(x, params):
    b, c, h, w = x.shape
    xr = x.reshape(b, NUM_GROUPS, c // NUM_GROUPS, h, w)
    mean = xr.mean(axis=(2, 3, 4), keepdims=True)
    var = xr.var(axis=(2, 3, 4), keepdims=True)
    hn = (xr - mean) / jnp.sqrt(var + EPS)
    hn = hn.reshape(b, c, h, w)
    hn = hn * params["gamma"][None, :, None, None] + params["beta"][None, :, None, None]

    def conv1x1(t, wname, bname):
        wmat = params[wname].reshape(c, c)
        return (jnp.einsum("bchw,oc->bohw", t, wmat)
                + params[bname][None, :, None, None])

    q = conv1x1(hn, "wq", "bq")
    k = conv1x1(hn, "wk", "bk")
    v = conv1x1(hn, "wv", "bv")

    hw = h * w
    qf = q.reshape(b, c, hw).swapaxes(1, 2)          # (b, hw, c)
    kf = k.reshape(b, c, hw)                         # (b, c, hw)
    w_ = jnp.einsum("bic,bcj->bij", qf, kf) * (c ** (-0.5))
    w_ = jax.nn.softmax(w_, axis=-1)
    vf = v.reshape(b, c, hw)
    out = jnp.einsum("bcj,bij->bci", vf, w_)         # value @ w_.swapaxes(1,2)
    out = out.reshape(b, c, h, w)
    out = conv1x1(out, "wp", "bp")
    return x + out


def make_params(key, c):
    ks = jax.random.split(key, 10)
    s = 1.0 / jnp.sqrt(jnp.float32(c))
    return {
        "gamma": 1.0 + 0.1 * jax.random.normal(ks[0], (c,), jnp.float32),
        "beta": 0.1 * jax.random.normal(ks[1], (c,), jnp.float32),
        "wq": s * jax.random.normal(ks[2], (c, c, 1, 1), jnp.float32),
        "bq": 0.1 * jax.random.normal(ks[3], (c,), jnp.float32),
        "wk": s * jax.random.normal(ks[4], (c, c, 1, 1), jnp.float32),
        "bk": 0.1 * jax.random.normal(ks[5], (c,), jnp.float32),
        "wv": s * jax.random.normal(ks[6], (c, c, 1, 1), jnp.float32),
        "bv": 0.1 * jax.random.normal(ks[7], (c,), jnp.float32),
        "wp": s * jax.random.normal(ks[8], (c, c, 1, 1), jnp.float32),
        "bp": 0.1 * jax.random.normal(ks[9], (c,), jnp.float32),
    }


if __name__ == "__main__":
    key = jax.random.PRNGKey(0)
    kx, kp = jax.random.split(key)

    B, C, H, W = 2, 32, 8, 8          # C must be divisible by NUM_GROUPS=16
    x = jax.random.normal(kx, (B, C, H, W), jnp.float32)
    params = make_params(kp, C)

    # q_tile=32 -> 2 query tiles per image: exercises the multi-tile attention grid
    out = jax.block_until_ready(attn_block_pallas(x, params, q_tile=32))
    ref = jax.block_until_ready(attn_block_reference(x, params))

    assert out.shape == x.shape and out.dtype == jnp.float32
    err = jnp.abs(out - ref)
    max_err = float(jnp.max(err))
    mean_err = float(jnp.mean(err))
    # bf16 MXU operands (f32 accumulation) vs. an exact-f32 reference: typical max err ~1e-2
    assert max_err < 1.5e-1 and mean_err < 2e-2, \
        f"mismatch vs reference: max {max_err}, mean {mean_err}"
    print("KERNEL_OK")
</pallas_src>

<mosaic_0001>
module attributes {stable_mosaic.version = 11 : i64} {
  func.func @kernel(%arg0: i32, %arg1: memref<1x64x32xf32, #tpu.memory_space<vmem>>, %arg2: memref<32x32xf32, #tpu.memory_space<vmem>>, %arg3: memref<32x32xbf16, #tpu.memory_space<vmem>>, %arg4: memref<32x32xbf16, #tpu.memory_space<vmem>>, %arg5: memref<32x32xbf16, #tpu.memory_space<vmem>>, %arg6: memref<3x32xf32, #tpu.memory_space<vmem>>, %arg7: memref<1x64x32xbf16, #tpu.memory_space<vmem>>, %arg8: memref<1x64x32xbf16, #tpu.memory_space<vmem>>, %arg9: memref<1x64x32xbf16, #tpu.memory_space<vmem>>) attributes {dimension_semantics = [#tpu.dimension_semantics<parallel>], iteration_bounds = array<i64: 2>, scalar_prefetch = 0 : i64, scratch_operands = 0 : i64, tpu.core_type = #tpu.core_type<tc>, window_params = [{transform_indices = @transform_0, window_bounds = array<i64: 1, 64, 32>}, {pipeline_mode = #tpu.pipeline_mode<synchronous>, transform_indices = @transform_1, window_bounds = array<i64: 32, 32>}, {pipeline_mode = #tpu.pipeline_mode<synchronous>, transform_indices = @transform_2, window_bounds = array<i64: 32, 32>}, {pipeline_mode = #tpu.pipeline_mode<synchronous>, transform_indices = @transform_3, window_bounds = array<i64: 32, 32>}, {pipeline_mode = #tpu.pipeline_mode<synchronous>, transform_indices = @transform_4, window_bounds = array<i64: 32, 32>}, {pipeline_mode = #tpu.pipeline_mode<synchronous>, transform_indices = @transform_5, window_bounds = array<i64: 3, 32>}, {transform_indices = @transform_6, window_bounds = array<i64: 1, 64, 32>}, {transform_indices = @transform_7, window_bounds = array<i64: 1, 64, 32>}, {transform_indices = @transform_8, window_bounds = array<i64: 1, 64, 32>}]} {
    %cst = arith.constant 0.000000e+00 : f32
    %0 = vector.broadcast %cst : f32 to vector<1x32xf32>
    %c0_i32 = arith.constant 0 : i32
    %c64_i32 = arith.constant 64 : i32
    %1 = arith.muli %c0_i32, %c64_i32 : i32
    %2 = tpu.assume_multiple %1, 64 : i32
    %c0 = arith.constant 0 : index
    %3 = arith.index_cast %2 : i32 to index
    %c0_0 = arith.constant 0 : index
    %4 = vector.load %arg1[%c0, %3, %c0_0] : memref<1x64x32xf32, #tpu.memory_space<vmem>>, vector<1x64x32xf32>
    %5 = vector.shape_cast %4 : vector<1x64x32xf32> to vector<64x32xf32>
    %cst_1 = arith.constant dense<0.000000e+00> : vector<32xf32>
    %6 = vector.multi_reduction <add>, %5, %cst_1 [0] : vector<64x32xf32> to vector<32xf32>
    %7 = vector.shape_cast %6 : vector<32xf32> to vector<1x32xf32>
    %8 = arith.addf %0, %7 : vector<1x32xf32>
    %9 = arith.mulf %5, %5 : vector<64x32xf32>
    %cst_2 = arith.constant dense<0.000000e+00> : vector<32xf32>
    %10 = vector.multi_reduction <add>, %9, %cst_2 [0] : vector<64x32xf32> to vector<32xf32>
    %11 = vector.shape_cast %10 : vector<32xf32> to vector<1x32xf32>
    %12 = arith.addf %0, %11 : vector<1x32xf32>
    %c1_i32 = arith.constant 1 : i32
    %c0_3 = arith.constant 0 : index
    %c0_4 = arith.constant 0 : index
    %13 = vector.load %arg2[%c0_3, %c0_4] : memref<32x32xf32, #tpu.memory_space<vmem>>, vector<32x32xf32>
    %cst_5 = arith.constant dense<0.000000e+00> : vector<1x32xf32>
    %14 = tpu.matmul %8, %13, %cst_5 {dimension_numbers = #tpu.dot_dimension_numbers<[1], [0], [0], [1], [0, 0, 1, 1], [], []>} : vector<1x32xf32>, vector<32x32xf32>, vector<1x32xf32> -> vector<1x32xf32>
    %c0_6 = arith.constant 0 : index
    %c0_7 = arith.constant 0 : index
    %15 = vector.load %arg2[%c0_6, %c0_7] : memref<32x32xf32, #tpu.memory_space<vmem>>, vector<32x32xf32>
    %cst_8 = arith.constant dense<0.000000e+00> : vector<1x32xf32>
    %16 = tpu.matmul %12, %15, %cst_8 {dimension_numbers = #tpu.dot_dimension_numbers<[1], [0], [0], [1], [0, 0, 1, 1], [], []>} : vector<1x32xf32>, vector<32x32xf32>, vector<1x32xf32> -> vector<1x32xf32>
    %17 = arith.mulf %14, %14 : vector<1x32xf32>
    %18 = arith.subf %16, %17 : vector<1x32xf32>
    %cst_9 = arith.constant 0.000000e+00 : f32
    %19 = vector.broadcast %cst_9 : f32 to vector<1x32xf32>
    %20 = arith.maximumf %18, %19 : vector<1x32xf32>
    %cst_10 = arith.constant 9.99999997E-7 : f32
    %21 = vector.broadcast %cst_10 : f32 to vector<1x32xf32>
    %22 = arith.addf %20, %21 : vector<1x32xf32>
    %23 = math.rsqrt %22 : vector<1x32xf32>
    %c0_11 = arith.constant 0 : index
    %c0_12 = arith.constant 0 : index
    %24 = vector.load %arg6[%c0_11, %c0_12] : memref<3x32xf32, #tpu.memory_space<vmem>>, vector<1x32xf32>
    %c1 = arith.constant 1 : index
    %c0_13 = arith.constant 0 : index
    %25 = vector.load %arg6[%c1, %c0_13] : memref<3x32xf32, #tpu.memory_space<vmem>>, vector<1x32xf32>
    %c2 = arith.constant 2 : index
    %c0_14 = arith.constant 0 : index
    %26 = vector.load %arg6[%c2, %c0_14] : memref<3x32xf32, #tpu.memory_space<vmem>>, vector<1x32xf32>
    %c0_i32_15 = arith.constant 0 : i32
    %c64_i32_16 = arith.constant 64 : i32
    %27 = arith.muli %c0_i32_15, %c64_i32_16 : i32
    %28 = tpu.assume_multiple %27, 64 : i32
    %c0_17 = arith.constant 0 : index
    %29 = arith.index_cast %28 : i32 to index
    %c0_18 = arith.constant 0 : index
    %30 = vector.load %arg1[%c0_17, %29, %c0_18] : memref<1x64x32xf32, #tpu.memory_space<vmem>>, vector<1x64x32xf32>
    %31 = vector.shape_cast %30 : vector<1x64x32xf32> to vector<64x32xf32>
    %32 = vector.broadcast %14 : vector<1x32xf32> to vector<64x32xf32>
    %33 = arith.subf %31, %32 : vector<64x32xf32>
    %34 = vector.broadcast %23 : vector<1x32xf32> to vector<64x32xf32>
    %35 = arith.mulf %33, %34 : vector<64x32xf32>
    %36 = arith.truncf %35 : vector<64x32xf32> to vector<64x32xbf16>
    %c0_19 = arith.constant 0 : index
    %c0_20 = arith.constant 0 : index
    %37 = vector.load %arg3[%c0_19, %c0_20] : memref<32x32xbf16, #tpu.memory_space<vmem>>, vector<32x32xbf16>
    %cst_21 = arith.constant dense<0.000000e+00> : vector<64x32xf32>
    %38 = tpu.matmul %36, %37, %cst_21 {dimension_numbers = #tpu.dot_dimension_numbers<[1], [0], [0], [1], [0, 0, 1, 1], [], []>} : vector<64x32xbf16>, vector<32x32xbf16>, vector<64x32xf32> -> vector<64x32xf32>
    %39 = vector.broadcast %24 : vector<1x32xf32> to vector<64x32xf32>
    %40 = arith.addf %38, %39 : vector<64x32xf32>
    %41 = arith.truncf %40 : vector<64x32xf32> to vector<64x32xbf16>
    %c0_22 = arith.constant 0 : index
    %42 = arith.index_cast %28 : i32 to index
    %c0_23 = arith.constant 0 : index
    %43 = vector.load %arg7[%c0_22, %42, %c0_23] : memref<1x64x32xbf16, #tpu.memory_space<vmem>>, vector<1x64x32xbf16>
    %44 = vector.shape_cast %43 : vector<1x64x32xbf16> to vector<64x32xbf16>
    %45 = vector.shape_cast %41 : vector<64x32xbf16> to vector<1x64x32xbf16>
    tpu.vector_store %arg7[%c0_22, %42, %c0_23], %45 {strides = array<i32>} : memref<1x64x32xbf16, #tpu.memory_space<vmem>>, vector<1x64x32xbf16>,
    %c0_24 = arith.constant 0 : index
    %c0_25 = arith.constant 0 : index
    %46 = vector.load %arg4[%c0_24, %c0_25] : memref<32x32xbf16, #tpu.memory_space<vmem>>, vector<32x32xbf16>
    %cst_26 = arith.constant dense<0.000000e+00> : vector<64x32xf32>
    %47 = tpu.matmul %36, %46, %cst_26 {dimension_numbers = #tpu.dot_dimension_numbers<[1], [0], [0], [1], [0, 0, 1, 1], [], []>} : vector<64x32xbf16>, vector<32x32xbf16>, vector<64x32xf32> -> vector<64x32xf32>
    %48 = vector.broadcast %25 : vector<1x32xf32> to vector<64x32xf32>
    %49 = arith.addf %47, %48 : vector<64x32xf32>
    %50 = arith.truncf %49 : vector<64x32xf32> to vector<64x32xbf16>
    %c0_27 = arith.constant 0 : index
    %51 = arith.index_cast %28 : i32 to index
    %c0_28 = arith.constant 0 : index
    %52 = vector.load %arg8[%c0_27, %51, %c0_28] : memref<1x64x32xbf16, #tpu.memory_space<vmem>>, vector<1x64x32xbf16>
    %53 = vector.shape_cast %52 : vector<1x64x32xbf16> to vector<64x32xbf16>
    %54 = vector.shape_cast %50 : vector<64x32xbf16> to vector<1x64x32xbf16>
    tpu.vector_store %arg8[%c0_27, %51, %c0_28], %54 {strides = array<i32>} : memref<1x64x32xbf16, #tpu.memory_space<vmem>>, vector<1x64x32xbf16>,
    %c0_29 = arith.constant 0 : index
    %c0_30 = arith.constant 0 : index
    %55 = vector.load %arg5[%c0_29, %c0_30] : memref<32x32xbf16, #tpu.memory_space<vmem>>, vector<32x32xbf16>
    %cst_31 = arith.constant dense<0.000000e+00> : vector<64x32xf32>
    %56 = tpu.matmul %36, %55, %cst_31 {dimension_numbers = #tpu.dot_dimension_numbers<[1], [0], [0], [1], [0, 0, 1, 1], [], []>} : vector<64x32xbf16>, vector<32x32xbf16>, vector<64x32xf32> -> vector<64x32xf32>
    %57 = vector.broadcast %26 : vector<1x32xf32> to vector<64x32xf32>
    %58 = arith.addf %56, %57 : vector<64x32xf32>
    %59 = arith.truncf %58 : vector<64x32xf32> to vector<64x32xbf16>
    %c0_32 = arith.constant 0 : index
    %60 = arith.index_cast %28 : i32 to index
    %c0_33 = arith.constant 0 : index
    %61 = vector.load %arg9[%c0_32, %60, %c0_33] : memref<1x64x32xbf16, #tpu.memory_space<vmem>>, vector<1x64x32xbf16>
    %62 = vector.shape_cast %61 : vector<1x64x32xbf16> to vector<64x32xbf16>
    %63 = vector.shape_cast %59 : vector<64x32xbf16> to vector<1x64x32xbf16>
    tpu.vector_store %arg9[%c0_32, %60, %c0_33], %63 {strides = array<i32>} : memref<1x64x32xbf16, #tpu.memory_space<vmem>>, vector<1x64x32xbf16>,
    %c1_i32_34 = arith.constant 1 : i32
    return
  }
  func.func @transform_0(%arg0: i32) -> (i32, i32, i32) {
    %c0_i32 = arith.constant 0 : i32
    %c0_i32_0 = arith.constant 0 : i32
    %c0_i32_1 = arith.constant 0 : i32
    return %arg0, %c0_i32, %c0_i32_0 : i32, i32, i32
  }
  func.func @transform_1(%arg0: i32) -> (i32, i32) {
    %c0_i32 = arith.constant 0 : i32
    %c0_i32_0 = arith.constant 0 : i32
    %c0_i32_1 = arith.constant 0 : i32
    return %c0_i32, %c0_i32_0 : i32, i32
  }
  func.func @transform_2(%arg0: i32) -> (i32, i32) {
    %c0_i32 = arith.constant 0 : i32
    %c0_i32_0 = arith.constant 0 : i32
    %c0_i32_1 = arith.constant 0 : i32
    return %c0_i32, %c0_i32_0 : i32, i32
  }
  func.func @transform_3(%arg0: i32) -> (i32, i32) {
    %c0_i32 = arith.constant 0 : i32
    %c0_i32_0 = arith.constant 0 : i32
    %c0_i32_1 = arith.constant 0 : i32
    return %c0_i32, %c0_i32_0 : i32, i32
  }
  func.func @transform_4(%arg0: i32) -> (i32, i32) {
    %c0_i32 = arith.constant 0 : i32
    %c0_i32_0 = arith.constant 0 : i32
    %c0_i32_1 = arith.constant 0 : i32
    return %c0_i32, %c0_i32_0 : i32, i32
  }
  func.func @transform_5(%arg0: i32) -> (i32, i32) {
    %c0_i32 = arith.constant 0 : i32
    %c0_i32_0 = arith.constant 0 : i32
    %c0_i32_1 = arith.constant 0 : i32
    return %c0_i32, %c0_i32_0 : i32, i32
  }
  func.func @transform_6(%arg0: i32) -> (i32, i32, i32) {
    %c0_i32 = arith.constant 0 : i32
    %c0_i32_0 = arith.constant 0 : i32
    %c0_i32_1 = arith.constant 0 : i32
    return %arg0, %c0_i32, %c0_i32_0 : i32, i32, i32
  }
  func.func @transform_7(%arg0: i32) -> (i32, i32, i32) {
    %c0_i32 = arith.constant 0 : i32
    %c0_i32_0 = arith.constant 0 : i32
    %c0_i32_1 = arith.constant 0 : i32
    return %arg0, %c0_i32, %c0_i32_0 : i32, i32, i32
  }
  func.func @transform_8(%arg0: i32) -> (i32, i32, i32) {
    %c0_i32 = arith.constant 0 : i32
    %c0_i32_0 = arith.constant 0 : i32
    %c0_i32_1 = arith.constant 0 : i32
    return %arg0, %c0_i32, %c0_i32_0 : i32, i32, i32
  }
}

</mosaic_0001>

<llo_original>
// kernel: tpu_custom_call.1
$region0: #{tpu_custom_call.1}
  #allocation0 [shape = 'u32[]', space=smem, size = 0x4, offset = 0x4, fixed_abs, tag = 'smem constant byte address 0x4 - core index']
  #allocation1 [shape = 'u32[72,128]{1,0:T(1,128)}', space=vmem, size = 0x9000, scoped, tag = 'internal scratch']
  %s0 = inlined_call_operand.vmem [shape: f32[2,64,32], index: 0, kind: input, shape index: {}]
  %s1 = inlined_call_operand.vmem [shape: f32[32,32], index: 1, kind: input, shape index: {}]
  %s2 = inlined_call_operand.vmem [shape: bf16[32,32], index: 2, kind: input, shape index: {}]
  %s3 = inlined_call_operand.vmem [shape: bf16[32,32], index: 3, kind: input, shape index: {}]
  %s4 = inlined_call_operand.vmem [shape: bf16[32,32], index: 4, kind: input, shape index: {}]
  %s5 = inlined_call_operand.vmem [shape: f32[3,32], index: 5, kind: input, shape index: {}]
  %s6 = inlined_call_operand.vmem [shape: bf16[2,64,32], index: 6, kind: output, shape index: {0}]
  %s7 = inlined_call_operand.vmem [shape: bf16[2,64,32], index: 7, kind: output, shape index: {1}]
  %s8 = inlined_call_operand.vmem [shape: bf16[2,64,32], index: 8, kind: output, shape index: {2}]
  %9 = xla_tuple %s6, %s7, %s8
  %s10 = sld [smem:[#allocation0]]
  $region73: #{tpu_custom_call.1} parent=0
    _
  %s12 = ssub.s32 1, %s10
  %s13 = scalar_select 0, %s12, %s10
  loop: start=0, step=1, limit=4
  $region2: #{tpu_custom_call.1} parent=0 // loop_pre_header
    _
  $region3: #{tpu_custom_call.1} parent=0 // loop_header
    %s15 = sphi 0, %s19
    %p16 = scmp.ge.s32.totalorder %s15, 4
    %s25 = sphi 0, %s27
    %s28 = sphi 0, %s25
    %s29 = sphi 0, %s28
    %s45 = sphi 0, %s29
    %s49 = sphi 0, %s49
    %s51 = sphi 0, %s49
    %s52 = sphi 0, %s51
    %s66 = sphi 0, %s52
    %s70 = sphi 0, %s70
    %s72 = sphi 0, %s70
    %s73 = sphi 0, %s72
    %s87 = sphi 0, %s73
    %s91 = sphi 0, %s91
    %s93 = sphi 0, %s91
    %s94 = sphi 0, %s93
    %s108 = sphi 0, %s94
    %s112 = sphi 0, %s112
    %s114 = sphi 0, %s112
    %s115 = sphi 0, %s114
    %s129 = sphi 0, %s115
    %s133 = sphi 0, %s133
    %s135 = sphi 0, %s133
    %s136 = sphi 0, %s135
    %s150 = sphi 0, %s136
    %s156 = sphi 0, %s158
    %s159 = sphi 0, %s156
    %s160 = sphi 0, %s159
    %s176 = sphi 0, %s160
    %s182 = sphi 0, %s184
    %s185 = sphi 0, %s182
    %s186 = sphi 0, %s185
    %s202 = sphi 0, %s186
    %s208 = sphi 0, %s210
    %s211 = sphi 0, %s208
    %s212 = sphi 0, %s211
    %s228 = sphi 0, %s212
  $region4: #{tpu_custom_call.1} parent=0 // loop_header_branch
    %18 = sbr.rel (%p16) target = $region8
  $region5: #{tpu_custom_call.1} parent=0 // loop_body
    %s20 = ssub.s32 %s15, 1
    %s21 = ssub.s32 %s15, 2
    %s22 = sadd.s32 %s15, 1
    %s23 = ssub.s32 %s15, %s22
    %p24 = scmp.eq.s32.totalorder %s23, 0
    %s26 = sadd.s32 %s25, 1
    %s27 = scalar_select %p24, %s25, %s26
    %p30 = pneg %p24
    %p31 = scmp.eq.s32.totalorder %s15, 1
    %p32 = por %p30, %p31
    %p33 = scmp.ne.s32.totalorder %s25, %s28
    %p34 = scmp.eq.s32.totalorder %s15, 0
    %p35 = por %p33, %p34
    %p36 = scmp.ne.s32.totalorder %s25, %s28
    %p37 = scmp.eq.s32.totalorder %s20, 1
    %p38 = por %p36, %p37
    %p39 = scmp.ne.s32.totalorder %s28, %s29
    %p40 = scmp.eq.s32.totalorder %s20, 0
    %p41 = por %p39, %p40
    %p42 = scmp.ne.s32.totalorder %s28, %s29
    %p43 = scmp.eq.s32.totalorder %s21, 1
    %p44 = por %p42, %p43
    %p46 = scmp.ne.s32.totalorder %s29, %s45
    %p47 = scmp.eq.s32.totalorder %s21, 0
    %p48 = por %p46, %p47
    %s50 = sadd.s32 %s49, 1
    %p53 = scmp.eq.s32.totalorder %s15, 1
    %p54 = scmp.ne.s32.totalorder %s49, %s51
    %p55 = scmp.eq.s32.totalorder %s15, 0
    %p56 = por %p54, %p55
    %p57 = scmp.ne.s32.totalorder %s49, %s51
    %p58 = scmp.eq.s32.totalorder %s20, 1
    %p59 = por %p57, %p58
    %p60 = scmp.ne.s32.totalorder %s51, %s52
    %p61 = scmp.eq.s32.totalorder %s20, 0
    %p62 = por %p60, %p61
    %p63 = scmp.ne.s32.totalorder %s51, %s52
    %p64 = scmp.eq.s32.totalorder %s21, 1
    %p65 = por %p63, %p64
    %p67 = scmp.ne.s32.totalorder %s52, %s66
    %p68 = scmp.eq.s32.totalorder %s21, 0
    %p69 = por %p67, %p68
    %s71 = sadd.s32 %s70, 1
    %p74 = scmp.eq.s32.totalorder %s15, 1
    %p75 = scmp.ne.s32.totalorder %s70, %s72
    %p76 = scmp.eq.s32.totalorder %s15, 0
    %p77 = por %p75, %p76
    %p78 = scmp.ne.s32.totalorder %s70, %s72
    %p79 = scmp.eq.s32.totalorder %s20, 1
    %p80 = por %p78, %p79
    %p81 = scmp.ne.s32.totalorder %s72, %s73
    %p82 = scmp.eq.s32.totalorder %s20, 0
    %p83 = por %p81, %p82
    %p84 = scmp.ne.s32.totalorder %s72, %s73
    %p85 = scmp.eq.s32.totalorder %s21, 1
    %p86 = por %p84, %p85
    %p88 = scmp.ne.s32.totalorder %s73, %s87
    %p89 = scmp.eq.s32.totalorder %s21, 0
    %p90 = por %p88, %p89
    %s92 = sadd.s32 %s91, 1
    %p95 = scmp.eq.s32.totalorder %s15, 1
    %p96 = scmp.ne.s32.totalorder %s91, %s93
    %p97 = scmp.eq.s32.totalorder %s15, 0
    %p98 = por %p96, %p97
    %p99 = scmp.ne.s32.totalorder %s91, %s93
    %p100 = scmp.eq.s32.totalorder %s20, 1
    %p101 = por %p99, %p100
    %p102 = scmp.ne.s32.totalorder %s93, %s94
    %p103 = scmp.eq.s32.totalorder %s20, 0
    %p104 = por %p102, %p103
    %p105 = scmp.ne.s32.totalorder %s93, %s94
    %p106 = scmp.eq.s32.totalorder %s21, 1
    %p107 = por %p105, %p106
    %p109 = scmp.ne.s32.totalorder %s94, %s108
    %p110 = scmp.eq.s32.totalorder %s21, 0
    %p111 = por %p109, %p110
    %s113 = sadd.s32 %s112, 1
    %p116 = scmp.eq.s32.totalorder %s15, 1
    %p117 = scmp.ne.s32.totalorder %s112, %s114
    %p118 = scmp.eq.s32.totalorder %s15, 0
    %p119 = por %p117, %p118
    %p120 = scmp.ne.s32.totalorder %s112, %s114
    %p121 = scmp.eq.s32.totalorder %s20, 1
    %p122 = por %p120, %p121
    %p123 = scmp.ne.s32.totalorder %s114, %s115
    %p124 = scmp.eq.s32.totalorder %s20, 0
    %p125 = por %p123, %p124
    %p126 = scmp.ne.s32.totalorder %s114, %s115
    %p127 = scmp.eq.s32.totalorder %s21, 1
    %p128 = por %p126, %p127
    %p130 = scmp.ne.s32.totalorder %s115, %s129
    %p131 = scmp.eq.s32.totalorder %s21, 0
    %p132 = por %p130, %p131
    %s134 = sadd.s32 %s133, 1
    %p137 = scmp.eq.s32.totalorder %s15, 1
    %p138 = scmp.ne.s32.totalorder %s133, %s135
    %p139 = scmp.eq.s32.totalorder %s15, 0
    %p140 = por %p138, %p139
    %p141 = scmp.ne.s32.totalorder %s133, %s135
    %p142 = scmp.eq.s32.totalorder %s20, 1
    %p143 = por %p141, %p142
    %p144 = scmp.ne.s32.totalorder %s135, %s136
    %p145 = scmp.eq.s32.totalorder %s20, 0
    %p146 = por %p144, %p145
    %p147 = scmp.ne.s32.totalorder %s135, %s136
    %p148 = scmp.eq.s32.totalorder %s21, 1
    %p149 = por %p147, %p148
    %p151 = scmp.ne.s32.totalorder %s136, %s150
    %p152 = scmp.eq.s32.totalorder %s21, 0
    %p153 = por %p151, %p152
    %s154 = ssub.s32 %s15, %s22
    %p155 = scmp.eq.s32.totalorder %s154, 0
    %s157 = sadd.s32 %s156, 1
    %s158 = scalar_select %p155, %s156, %s157
    %p161 = pneg %p155
    %p162 = scmp.eq.s32.totalorder %s15, 1
    %p163 = por %p161, %p162
    %p164 = scmp.ne.s32.totalorder %s156, %s159
    %p165 = scmp.eq.s32.totalorder %s15, 0
    %p166 = por %p164, %p165
    %p167 = scmp.ne.s32.totalorder %s156, %s159
    %p168 = scmp.eq.s32.totalorder %s20, 1
    %p169 = por %p167, %p168
    %p170 = scmp.ne.s32.totalorder %s159, %s160
    %p171 = scmp.eq.s32.totalorder %s20, 0
    %p172 = por %p170, %p171
    %p173 = scmp.ne.s32.totalorder %s159, %s160
    %p174 = scmp.eq.s32.totalorder %s21, 1
    %p175 = por %p173, %p174
    %p177 = scmp.ne.s32.totalorder %s160, %s176
    %p178 = scmp.eq.s32.totalorder %s21, 0
    %p179 = por %p177, %p178
    %s180 = ssub.s32 %s15, %s22
    %p181 = scmp.eq.s32.totalorder %s180, 0
    %s183 = sadd.s32 %s182, 1
    %s184 = scalar_select %p181, %s182, %s183
    %p187 = pneg %p181
    %p188 = scmp.eq.s32.totalorder %s15, 1
    %p189 = por %p187, %p188
    %p190 = scmp.ne.s32.totalorder %s182, %s185
    %p191 = scmp.eq.s32.totalorder %s15, 0
    %p192 = por %p190, %p191
    %p193 = scmp.ne.s32.totalorder %s182, %s185
    %p194 = scmp.eq.s32.totalorder %s20, 1
    %p195 = por %p193, %p194
    %p196 = scmp.ne.s32.totalorder %s185, %s186
    %p197 = scmp.eq.s32.totalorder %s20, 0
    %p198 = por %p196, %p197
    %p199 = scmp.ne.s32.totalorder %s185, %s186
    %p200 = scmp.eq.s32.totalorder %s21, 1
    %p201 = por %p199, %p200
    %p203 = scmp.ne.s32.totalorder %s186, %s202
    %p204 = scmp.eq.s32.totalorder %s21, 0
    %p205 = por %p203, %p204
    %s206 = ssub.s32 %s15, %s22
    %p207 = scmp.eq.s32.totalorder %s206, 0
    %s209 = sadd.s32 %s208, 1
    %s210 = scalar_select %p207, %s208, %s209
    %p213 = pneg %p207
    %p214 = scmp.eq.s32.totalorder %s15, 1
    %p215 = por %p213, %p214
    %p216 = scmp.ne.s32.totalorder %s208, %s211
    %p217 = scmp.eq.s32.totalorder %s15, 0
    %p218 = por %p216, %p217
    %p219 = scmp.ne.s32.totalorder %s208, %s211
    %p220 = scmp.eq.s32.totalorder %s20, 1
    %p221 = por %p219, %p220
    %p222 = scmp.ne.s32.totalorder %s211, %s212
    %p223 = scmp.eq.s32.totalorder %s20, 0
    %p224 = por %p222, %p223
    %p225 = scmp.ne.s32.totalorder %s211, %s212
    %p226 = scmp.eq.s32.totalorder %s21, 1
    %p227 = por %p225, %p226
    %p229 = scmp.ne.s32.totalorder %s212, %s228
    %p230 = scmp.eq.s32.totalorder %s21, 0
    %p231 = por %p229, %p230
    %p232 = scmp.le.s32.totalorder 1, %s15
    %p233 = scmp.lt.s32.totalorder %s15, 3
    %p234 = pnand %p232, %p233
    %p235 = pneg %p234
    // Predicated region
    $region9: #{tpu_custom_call.1} parent=5 // pred_check
      _
    $region10: #{tpu_custom_call.1} parent=5 // pred_check_branch
      %237 = sbr.rel (%p234) target = $region12
    $region11: #{tpu_custom_call.1} parent=5 // pred_region
      %s238 = ssub.s32 %s15, 1
      // Predicated region
      $region13: #{tpu_custom_call.1} parent=11 // pred_check
        %p239 = pneg %p62
      $region14: #{tpu_custom_call.1} parent=11 // pred_check_branch
        %241 = sbr.rel (%p239) target = $region16
      $region15: #{tpu_custom_call.1} parent=11 // pred_region
        _
      $region16: #{tpu_custom_call.1} parent=11 // pred_fallthru
        _
      // Predicated region
      $region17: #{tpu_custom_call.1} parent=11 // pred_check
        %p242 = pneg %p83
      $region18: #{tpu_custom_call.1} parent=11 // pred_check_branch
        %244 = sbr.rel (%p242) target = $region20
      $region19: #{tpu_custom_call.1} parent=11 // pred_region
        _
      $region20: #{tpu_custom_call.1} parent=11 // pred_fallthru
        _
      // Predicated region
      $region21: #{tpu_custom_call.1} parent=11 // pred_check
        %p245 = pneg %p104
      $region22: #{tpu_custom_call.1} parent=11 // pred_check_branch
        %247 = sbr.rel (%p245) target = $region24
      $region23: #{tpu_custom_call.1} parent=11 // pred_region
        _
      $region24: #{tpu_custom_call.1} parent=11 // pred_fallthru
        _
      // Predicated region
      $region25: #{tpu_custom_call.1} parent=11 // pred_check
        %p248 = pneg %p125
      $region26: #{tpu_custom_call.1} parent=11 // pred_check_branch
        %250 = sbr.rel (%p248) target = $region28
      $region27: #{tpu_custom_call.1} parent=11 // pred_region
        _
      $region28: #{tpu_custom_call.1} parent=11 // pred_fallthru
        _
      // Predicated region
      $region29: #{tpu_custom_call.1} parent=11 // pred_check
        %p251 = pneg %p146
      $region30: #{tpu_custom_call.1} parent=11 // pred_check_branch
        %253 = sbr.rel (%p251) target = $region32
      $region31: #{tpu_custom_call.1} parent=11 // pred_region
        _
      $region32: #{tpu_custom_call.1} parent=11 // pred_fallthru
        _
    $region12: #{tpu_custom_call.1} parent=5 // pred_fallthru
      _
    %p254 = scmp.lt.s32.totalorder %s15, 2
    // Predicated region
    $region33: #{tpu_custom_call.1} parent=5 // pred_check
      %p255 = pneg %p254
    $region34: #{tpu_custom_call.1} parent=5 // pred_check_branch
      %257 = sbr.rel (%p255) target = $region36
    $region35: #{tpu_custom_call.1} parent=5 // pred_region
      // Predicated region
      $region37: #{tpu_custom_call.1} parent=35 // pred_check
        %p258 = pneg %p35
      $region38: #{tpu_custom_call.1} parent=35 // pred_check_branch
        %260 = sbr.rel (%p258) target = $region40
      $region39: #{tpu_custom_call.1} parent=35 // pred_region
        %p261 = scmp.lt.s32.totalorder %s15, 1
        %s262 = scalar_select %p261, %s15, 1
        %s263 = smul.addr %s262, 8
        %s264 = smul.addr %s263, 8
        %s265 = scalar_lea.vmem %s0, %s264
      $region40: #{tpu_custom_call.1} parent=35 // pred_fallthru
        _
    $region36: #{tpu_custom_call.1} parent=5 // pred_fallthru
      _
    %p266 = scmp.le.s32.totalorder 1, %s15
    %p267 = scmp.lt.s32.totalorder %s15, 3
    %p268 = pnand %p266, %p267
    %p269 = pneg %p268
    // Predicated region
    $region41: #{tpu_custom_call.1} parent=5 // pred_check
      _
    $region42: #{tpu_custom_call.1} parent=5 // pred_check_branch
      %271 = sbr.rel (%p268) target = $region44
    $region43: #{tpu_custom_call.1} parent=5 // pred_region
      %s272 = ssub.s32 %s15, 1
      %p273 = scmp.lt.s32.totalorder %s20, 1
      %s274 = scalar_select %p273, %s20, 1
      %s275 = smul.addr %s274, 8
      %s276 = smul.addr %s275, 8
      %s277 = scalar_lea.vmem %s0, %s276
      %p278 = pneg %p41
      %p279 = pneg %p38
      %p280 = pneg %p62
      %p281 = pneg %p59
      %p282 = pneg %p83
      %p283 = pneg %p80
      %p284 = pneg %p104
      %p285 = pneg %p101
      %p286 = pneg %p125
      %p287 = pneg %p122
      %p288 = pneg %p146
      %p289 = pneg %p143
      %p290 = pneg %p172
      %p291 = pneg %p169
      %p292 = scmp.lt.s32.totalorder %s20, 1
      %s293 = scalar_select %p292, %s20, 1
      %s294 = smul.addr %s293, 8
      %s295 = smul.addr %s294, 4
      %s296 = scalar_lea.vmem %s6, %s295
      %p297 = pneg %p198
      %p298 = pneg %p195
      %p299 = scmp.lt.s32.totalorder %s20, 1
      %s300 = scalar_select %p299, %s20, 1
      %s301 = smul.addr %s300, 8
      %s302 = smul.addr %s301, 4
      %s303 = scalar_lea.vmem %s7, %s302
      %p304 = pneg %p224
      %p305 = pneg %p221
      %p306 = scmp.lt.s32.totalorder %s20, 1
      %s307 = scalar_select %p306, %s20, 1
      %s308 = smul.addr %s307, 8
      %s309 = smul.addr %s308, 4
      %s310 = scalar_lea.vmem %s8, %s309
      %p311 = scmp.lt.s32.totalorder %s20, 1
      %s312 = scalar_select %p311, %s20, 1
      %s313 = smul.addr %s312, 8
      %s314 = smul.addr %s313, 8
      %s315 = scalar_lea.vmem %s0, %s314
      %p316 = scmp.lt.s32.totalorder %s20, 1
      %s317 = scalar_select %p316, %s20, 1
      %s318 = smul.addr %s317, 8
      %s319 = smul.addr %s318, 4
      %s320 = scalar_lea.vmem %s6, %s319
      %p321 = scmp.lt.s32.totalorder %s20, 1
      %s322 = scalar_select %p321, %s20, 1
      %s323 = smul.addr %s322, 8
      %s324 = smul.addr %s323, 4
      %s325 = scalar_lea.vmem %s7, %s324
      %p326 = scmp.lt.s32.totalorder %s20, 1
      %s327 = scalar_select %p326, %s20, 1
      %s328 = smul.addr %s327, 8
      %s329 = smul.addr %s328, 4
      %s330 = scalar_lea.vmem %s8, %s329
      %v332 = vld [vmem:[%s315] sm:$0xff]
      %v333 = vld [vmem:[%s315 + $0x8] sm:$0xff]
      %v334 = vld [vmem:[%s315 + $0x10] sm:$0xff]
      %v335 = vld [vmem:[%s315 + $0x18] sm:$0xff]
      %v336 = vld [vmem:[%s315 + $0x20] sm:$0xff]
      %v337 = vld [vmem:[%s315 + $0x28] sm:$0xff]
      %v338 = vld [vmem:[%s315 + $0x30] sm:$0xff]
      %v339 = vld [vmem:[%s315 + $0x38] sm:$0xff]
      %vm340 = vcmask 261120
      %v341 = vsel %vm340, %v332, 0.0
      %v342 = vsel %vm340, %v333, 0.0
      %v343 = vadd.f32 %v341, %v342
      %v344 = vsel %vm340, %v334, 0.0
      %v345 = vadd.f32 %v343, %v344
      %v346 = vsel %vm340, %v335, 0.0
      %v347 = vadd.f32 %v345, %v346
      %v348 = vsel %vm340, %v336, 0.0
      %v349 = vadd.f32 %v347, %v348
      %v350 = vsel %vm340, %v337, 0.0
      %v351 = vadd.f32 %v349, %v350
      %v352 = vsel %vm340, %v338, 0.0
      %v353 = vadd.f32 %v351, %v352
      %v354 = vsel %vm340, %v339, 0.0
      %v355 = vadd.f32 %v353, %v354
      %v356 = vrot.slane %v355, 4
      %v357 = vadd.f32 %v355, %v356
      %v358 = vrot.slane %v357, 2
      %v359 = vadd.f32 %v357, %v358
      %v360 = vrot.slane %v359, 1
      %v361 = vadd.f32 %v359, %v360
      %v362 = vadd.f32 %v361, 0.0
      %v363 = vmul.f32 %v332, %v332
      %v364 = vmul.f32 %v333, %v333
      %v365 = vmul.f32 %v334, %v334
      %v366 = vmul.f32 %v335, %v335
      %v367 = vmul.f32 %v336, %v336
      %v368 = vmul.f32 %v337, %v337
      %v369 = vmul.f32 %v338, %v338
      %v370 = vmul.f32 %v339, %v339
      %v371 = vsel %vm340, %v363, 0.0
      %v372 = vsel %vm340, %v364, 0.0
      %v373 = vadd.f32 %v371, %v372
      %v374 = vsel %vm340, %v365, 0.0
      %v375 = vadd.f32 %v373, %v374
      %v376 = vsel %vm340, %v366, 0.0
      %v377 = vadd.f32 %v375, %v376
      %v378 = vsel %vm340, %v367, 0.0
      %v379 = vadd.f32 %v377, %v378
      %v380 = vsel %vm340, %v368, 0.0
      %v381 = vadd.f32 %v379, %v380
      %v382 = vsel %vm340, %v369, 0.0
      %v383 = vadd.f32 %v381, %v382
      %v384 = vsel %vm340, %v370, 0.0
      %v385 = vadd.f32 %v383, %v384
      %v386 = vrot.slane %v385, 4
      %v387 = vadd.f32 %v385, %v386
      %v388 = vrot.slane %v387, 2
      %v389 = vadd.f32 %v387, %v388
      %v390 = vrot.slane %v389, 1
      %v391 = vadd.f32 %v389, %v390
      %v392 = vadd.f32 %v391, 0.0
      %v393 = vld [vmem:[%s1] sm:$0xff]
      %v394 = vld [vmem:[%s1 + $0x8] sm:$0xff]
      %v395 = vld [vmem:[%s1 + $0x10] sm:$0xff]
      %v396 = vld [vmem:[%s1 + $0x18] sm:$0xff]
      %v398 = vsel %vm340, %v362, 0
      %400 = vmatpush.msra.mxu0 0.0
      %401 = vmatpush.msra.mxu0 0.0
      %402 = vmatpush.msra.mxu0 0.0
      %403 = vmatpush.msra.mxu0 0.0
      %404 = vmatpush.msra.mxu0 0.0
      %405 = vmatpush.msra.mxu0 0.0
      %406 = vmatpush.msra.mxu0 0.0
      %407 = vmatpush.msra.mxu0 0.0
      %408 = vmatpush.msra.mxu0 0.0
      %409 = vmatpush.msra.mxu0 0.0
      %410 = vmatpush.msra.mxu0 0.0
      %411 = vmatpush.msra.mxu0 0.0
      %412 = vmatpush.msra.mxu0 %v396
      %413 = vmatpush.msra.mxu0 %v395
      %414 = vmatpush.msra.mxu0 %v394
      %415 = vmatpush.msra.mxu0 %v393
      %416 = vmatmul.f32.gmra.mxu0 %v398
      %v417 = vpop.f32.mrf.mxu0
      %v418 = vadd.f32 0.0, %v417
      %419 = vdwg.mxu0
      %v421 = vsel %vm340, %v392, 0
      %423 = vmatpush.msra.mxu0 0.0
      %424 = vmatpush.msra.mxu0 0.0
      %425 = vmatpush.msra.mxu0 0.0
      %426 = vmatpush.msra.mxu0 0.0
      %427 = vmatpush.msra.mxu0 0.0
      %428 = vmatpush.msra.mxu0 0.0
      %429 = vmatpush.msra.mxu0 0.0
      %430 = vmatpush.msra.mxu0 0.0
      %431 = vmatpush.msra.mxu0 0.0
      %432 = vmatpush.msra.mxu0 0.0
      %433 = vmatpush.msra.mxu0 0.0
      %434 = vmatpush.msra.mxu0 0.0
      %435 = vmatpush.msra.mxu0 %v396
      %436 = vmatpush.msra.mxu0 %v395
      %437 = vmatpush.msra.mxu0 %v394
      %438 = vmatpush.msra.mxu0 %v393
      %439 = vmatmul.f32.gmra.mxu0 %v421
      %v440 = vpop.f32.mrf.mxu0
      %v441 = vadd.f32 0.0, %v440
      %442 = vdwg.mxu0
      %v443 = vmul.f32 %v418, %v418
      %v444 = vsub.f32 %v441, %v443
      %v445 = vmax.f32 %v444, 0.0
      %v446 = vadd.f32 %v445, 1e-06
      %v447 = vrsqrt.pop %v446
      %v448 = vmul.f32 %v447, %v446
      %v449 = vmul.f32 %v448, %v447
      %v450 = vmul.f32 0.5, %v449
      %v451 = vsub.f32 1.5, %v450
      %v452 = vmul.f32 %v447, %v451
      %vm453 = vweird.f32 %v446
      %vm454 = vweird.f32 %v447
      %vm455 = vmor %vm453, %vm454
      %v456 = vsel %vm455, %v447, %v452
      %v457 = vld [vmem:[%s5] sm:$0x1]
      %v458 = vld [vmem:[%s5 + $0x1] sm:$0x1]
      %v459 = vld [vmem:[%s5 + $0x2] sm:$0x1]
      %v460 = vperm.slane %v418, 0
      %v461 = vsub.f32 %v332, %v460
      %v462 = vsub.f32 %v333, %v460
      %v463 = vsub.f32 %v334, %v460
      %v464 = vsub.f32 %v335, %v460
      %v465 = vsub.f32 %v336, %v460
      %v466 = vsub.f32 %v337, %v460
      %v467 = vsub.f32 %v338, %v460
      %v468 = vsub.f32 %v339, %v460
      %v469 = vperm.slane %v456, 0
      %v470 = vmul.f32 %v461, %v469
      %v471 = vmul.f32 %v462, %v469
      %v472 = vmul.f32 %v463, %v469
      %v473 = vmul.f32 %v464, %v469
      %v474 = vmul.f32 %v465, %v469
      %v475 = vmul.f32 %v466, %v469
      %v476 = vmul.f32 %v467, %v469
      %v477 = vmul.f32 %v468, %v469
      %v478 = vpack.c.bf16 %v471, %v470
      %v479 = vpack.c.bf16 %v473, %v472
      %v480 = vpack.c.bf16 %v475, %v474
      %v481 = vpack.c.bf16 %v477, %v476
      %v482 = vld [vmem:[%s2] sm:$0xf]
      %v483 = vld [vmem:[%s2 + $0x4] sm:$0xf]
      %v484 = vld [vmem:[%s2 + $0x8] sm:$0xf]
      %v485 = vld [vmem:[%s2 + $0xc] sm:$0xf]
      %v486 = vperm.slane %v457, 0
      %v491 = vunpack.c.l.b16 %v482
      %v492 = vunpack.c.l.b16 %v483
      %v493 = vunpack.c.l.b16 %v484
      %v494 = vunpack.c.l.b16 %v485
      %v495 = vpack.c.b16 %v492, %v491
      %v496 = vpack.c.b16 %v494, %v493
      %v500 = vsel %vm340, %v478, 0
      %v503 = vsel %vm340, %v479, 0
      %v506 = vsel %vm340, %v480, 0
      %v509 = vsel %vm340, %v481, 0
      %511 = vmatpush.bf16.msra.mxu0 0
      %512 = vmatpush.bf16.msra.mxu0 0
      %513 = vmatpush.bf16.msra.mxu0 0
      %514 = vmatpush.bf16.msra.mxu0 0
      %515 = vmatpush.bf16.msra.mxu0 0
      %516 = vmatpush.bf16.msra.mxu0 0
      %517 = vmatpush.bf16.msra.mxu0 %v496
      %518 = vmatpush.bf16.msra.mxu0 %v495
      %519 = vmatmul.bf16.gmra.mxu0 %v500
      %v520 = vpop.f32.mrf.mxu0
      %v521 = vadd.f32 %v486, %v520
      %v522 = vpop.f32.mrf.mxu0
      %v523 = vadd.f32 %v486, %v522
      %524 = vmatmul.bf16.gmra.mxu0 %v503
      %v525 = vpop.f32.mrf.mxu0
      %v526 = vadd.f32 %v486, %v525
      %v527 = vpop.f32.mrf.mxu0
      %v528 = vadd.f32 %v486, %v527
      %529 = vmatmul.bf16.gmra.mxu0 %v506
      %v530 = vpop.f32.mrf.mxu0
      %v531 = vadd.f32 %v486, %v530
      %v532 = vpop.f32.mrf.mxu0
      %v533 = vadd.f32 %v486, %v532
      %534 = vmatmul.bf16.gmra.mxu0 %v509
      %v535 = vpop.f32.mrf.mxu0
      %v536 = vadd.f32 %v486, %v535
      %v537 = vpop.f32.mrf.mxu0
      %v538 = vadd.f32 %v486, %v537
      %539 = vdwg.mxu0
      %v540 = vpack.c.bf16 %v521, %v521
      %v541 = vpack.c.bf16 %v523, %v523
      %v542 = vpack.c.bf16 %v526, %v526
      %v543 = vpack.c.bf16 %v528, %v528
      %v544 = vpack.c.bf16 %v531, %v531
      %v545 = vpack.c.bf16 %v533, %v533
      %v546 = vpack.c.bf16 %v536, %v536
      %v547 = vpack.c.bf16 %v538, %v538
      %vm548 = vcmask 257024
      %549 = vst.msk [vmem:[%s320] sm:$0xf] %vm548, %v540
      %550 = vst.msk [vmem:[%s320 + $0x4] sm:$0xf] %vm548, %v541
      %551 = vst.msk [vmem:[%s320 + $0x8] sm:$0xf] %vm548, %v542
      %552 = vst.msk [vmem:[%s320 + $0xc] sm:$0xf] %vm548, %v543
      %553 = vst.msk [vmem:[%s320 + $0x10] sm:$0xf] %vm548, %v544
      %554 = vst.msk [vmem:[%s320 + $0x14] sm:$0xf] %vm548, %v545
      %555 = vst.msk [vmem:[%s320 + $0x18] sm:$0xf] %vm548, %v546
      %556 = vst.msk [vmem:[%s320 + $0x1c] sm:$0xf] %vm548, %v547
      %v557 = vld [vmem:[%s3] sm:$0xf]
      %v558 = vld [vmem:[%s3 + $0x4] sm:$0xf]
      %v559 = vld [vmem:[%s3 + $0x8] sm:$0xf]
      %v560 = vld [vmem:[%s3 + $0xc] sm:$0xf]
      %v561 = vperm.slane %v458, 0
      %v566 = vunpack.c.l.b16 %v557
      %v567 = vunpack.c.l.b16 %v558
      %v568 = vunpack.c.l.b16 %v559
      %v569 = vunpack.c.l.b16 %v560
      %v570 = vpack.c.b16 %v567, %v566
      %v571 = vpack.c.b16 %v569, %v568
      %574 = vmatpush.bf16.msra.mxu0 0
      %575 = vmatpush.bf16.msra.mxu0 0
      %576 = vmatpush.bf16.msra.mxu0 0
      %577 = vmatpush.bf16.msra.mxu0 0
      %578 = vmatpush.bf16.msra.mxu0 0
      %579 = vmatpush.bf16.msra.mxu0 0
      %580 = vmatpush.bf16.msra.mxu0 %v571
      %581 = vmatpush.bf16.msra.mxu0 %v570
      %582 = vmatmul.bf16.gmra.mxu0 %v500
      %v583 = vpop.f32.mrf.mxu0
      %v584 = vadd.f32 %v561, %v583
      %v585 = vpop.f32.mrf.mxu0
      %v586 = vadd.f32 %v561, %v585
      %587 = vmatmul.bf16.gmra.mxu0 %v503
      %v588 = vpop.f32.mrf.mxu0
      %v589 = vadd.f32 %v561, %v588
      %v590 = vpop.f32.mrf.mxu0
      %v591 = vadd.f32 %v561, %v590
      %592 = vmatmul.bf16.gmra.mxu0 %v506
      %v593 = vpop.f32.mrf.mxu0
      %v594 = vadd.f32 %v561, %v593
      %v595 = vpop.f32.mrf.mxu0
      %v596 = vadd.f32 %v561, %v595
      %597 = vmatmul.bf16.gmra.mxu0 %v509
      %v598 = vpop.f32.mrf.mxu0
      %v599 = vadd.f32 %v561, %v598
      %v600 = vpop.f32.mrf.mxu0
      %v601 = vadd.f32 %v561, %v600
      %602 = vdwg.mxu0
      %v603 = vpack.c.bf16 %v584, %v584
      %v604 = vpack.c.bf16 %v586, %v586
      %v605 = vpack.c.bf16 %v589, %v589
      %v606 = vpack.c.bf16 %v591, %v591
      %v607 = vpack.c.bf16 %v594, %v594
      %v608 = vpack.c.bf16 %v596, %v596
      %v609 = vpack.c.bf16 %v599, %v599
      %v610 = vpack.c.bf16 %v601, %v601
      %611 = vst.msk [vmem:[%s325] sm:$0xf] %vm548, %v603
      %612 = vst.msk [vmem:[%s325 + $0x4] sm:$0xf] %vm548, %v604
      %613 = vst.msk [vmem:[%s325 + $0x8] sm:$0xf] %vm548, %v605
      %614 = vst.msk [vmem:[%s325 + $0xc] sm:$0xf] %vm548, %v606
      %615 = vst.msk [vmem:[%s325 + $0x10] sm:$0xf] %vm548, %v607
      %616 = vst.msk [vmem:[%s325 + $0x14] sm:$0xf] %vm548, %v608
      %617 = vst.msk [vmem:[%s325 + $0x18] sm:$0xf] %vm548, %v609
      %618 = vst.msk [vmem:[%s325 + $0x1c] sm:$0xf] %vm548, %v610
      %v619 = vld [vmem:[%s4] sm:$0xf]
      %v620 = vld [vmem:[%s4 + $0x4] sm:$0xf]
      %v621 = vld [vmem:[%s4 + $0x8] sm:$0xf]
      %v622 = vld [vmem:[%s4 + $0xc] sm:$0xf]
      %v623 = vperm.slane %v459, 0
      %v628 = vunpack.c.l.b16 %v619
      %v629 = vunpack.c.l.b16 %v620
      %v630 = vunpack.c.l.b16 %v621
      %v631 = vunpack.c.l.b16 %v622
      %v632 = vpack.c.b16 %v629, %v628
      %v633 = vpack.c.b16 %v631, %v630
      %636 = vmatpush.bf16.msra.mxu0 0
      %637 = vmatpush.bf16.msra.mxu0 0
      %638 = vmatpush.bf16.msra.mxu0 0
      %639 = vmatpush.bf16.msra.mxu0 0
      %640 = vmatpush.bf16.msra.mxu0 0
      %641 = vmatpush.bf16.msra.mxu0 0
      %642 = vmatpush.bf16.msra.mxu0 %v633
      %643 = vmatpush.bf16.msra.mxu0 %v632
      %644 = vmatmul.bf16.gmra.mxu0 %v500
      %v645 = vpop.f32.mrf.mxu0
      %v646 = vadd.f32 %v623, %v645
      %v647 = vpop.f32.mrf.mxu0
      %v648 = vadd.f32 %v623, %v647
      %649 = vmatmul.bf16.gmra.mxu0 %v503
      %v650 = vpop.f32.mrf.mxu0
      %v651 = vadd.f32 %v623, %v650
      %v652 = vpop.f32.mrf.mxu0
      %v653 = vadd.f32 %v623, %v652
      %654 = vmatmul.bf16.gmra.mxu0 %v506
      %v655 = vpop.f32.mrf.mxu0
      %v656 = vadd.f32 %v623, %v655
      %v657 = vpop.f32.mrf.mxu0
      %v658 = vadd.f32 %v623, %v657
      %659 = vmatmul.bf16.gmra.mxu0 %v509
      %v660 = vpop.f32.mrf.mxu0
      %v661 = vadd.f32 %v623, %v660
      %v662 = vpop.f32.mrf.mxu0
      %v663 = vadd.f32 %v623, %v662
      %664 = vdwg.mxu0
      %v665 = vpack.c.bf16 %v646, %v646
      %v666 = vpack.c.bf16 %v648, %v648
      %v667 = vpack.c.bf16 %v651, %v651
      %v668 = vpack.c.bf16 %v653, %v653
      %v669 = vpack.c.bf16 %v656, %v656
      %v670 = vpack.c.bf16 %v658, %v658
      %v671 = vpack.c.bf16 %v661, %v661
      %v672 = vpack.c.bf16 %v663, %v663
      %673 = vst.msk [vmem:[%s330] sm:$0xf] %vm548, %v665
      %674 = vst.msk [vmem:[%s330 + $0x4] sm:$0xf] %vm548, %v666
      %675 = vst.msk [vmem:[%s330 + $0x8] sm:$0xf] %vm548, %v667
      %676 = vst.msk [vmem:[%s330 + $0xc] sm:$0xf] %vm548, %v668
      %677 = vst.msk [vmem:[%s330 + $0x10] sm:$0xf] %vm548, %v669
      %678 = vst.msk [vmem:[%s330 + $0x14] sm:$0xf] %vm548, %v670
      %679 = vst.msk [vmem:[%s330 + $0x18] sm:$0xf] %vm548, %v671
      %680 = vst.msk [vmem:[%s330 + $0x1c] sm:$0xf] %vm548, %v672
      %p681 = scmp.lt.s32.totalorder %s20, 1
      %s682 = scalar_select %p681, %s20, 1
      %s683 = smul.addr %s682, 8
      %s684 = smul.addr %s683, 4
      %s685 = scalar_lea.vmem %s6, %s684
      %p686 = scmp.lt.s32.totalorder %s20, 1
      %s687 = scalar_select %p686, %s20, 1
      %s688 = smul.addr %s687, 8
      %s689 = smul.addr %s688, 4
      %s690 = scalar_lea.vmem %s7, %s689
      %p691 = scmp.lt.s32.totalorder %s20, 1
      %s692 = scalar_select %p691, %s20, 1
      %s693 = smul.addr %s692, 8
      %s694 = smul.addr %s693, 4
      %s695 = scalar_lea.vmem %s8, %s694
      // Predicated region
      $region45: #{tpu_custom_call.1} parent=43 // pred_check
        %p696 = pneg %p169
      $region46: #{tpu_custom_call.1} parent=43 // pred_check_branch
        %698 = sbr.rel (%p696) target = $region48
      $region47: #{tpu_custom_call.1} parent=43 // pred_region
        _
      $region48: #{tpu_custom_call.1} parent=43 // pred_fallthru
        _
      // Predicated region
      $region49: #{tpu_custom_call.1} parent=43 // pred_check
        %p699 = pneg %p195
      $region50: #{tpu_custom_call.1} parent=43 // pred_check_branch
        %701 = sbr.rel (%p699) target = $region52
      $region51: #{tpu_custom_call.1} parent=43 // pred_region
        _
      $region52: #{tpu_custom_call.1} parent=43 // pred_fallthru
        _
      // Predicated region
      $region53: #{tpu_custom_call.1} parent=43 // pred_check
        %p702 = pneg %p221
      $region54: #{tpu_custom_call.1} parent=43 // pred_check_branch
        %704 = sbr.rel (%p702) target = $region56
      $region55: #{tpu_custom_call.1} parent=43 // pred_region
        _
      $region56: #{tpu_custom_call.1} parent=43 // pred_fallthru
        _
    $region44: #{tpu_custom_call.1} parent=5 // pred_fallthru
      _
    %p705 = scmp.le.s32.totalorder 2, %s15
    // Predicated region
    $region57: #{tpu_custom_call.1} parent=5 // pred_check
      %p706 = pneg %p705
    $region58: #{tpu_custom_call.1} parent=5 // pred_check_branch
      %708 = sbr.rel (%p706) target = $region60
    $region59: #{tpu_custom_call.1} parent=5 // pred_region
      %s709 = ssub.s32 %s15, 2
      // Predicated region
      $region61: #{tpu_custom_call.1} parent=59 // pred_check
        %p710 = pneg %p175
      $region62: #{tpu_custom_call.1} parent=59 // pred_check_branch
        %712 = sbr.rel (%p710) target = $region64
      $region63: #{tpu_custom_call.1} parent=59 // pred_region
        %p713 = scmp.lt.s32.totalorder %s21, 1
        %s714 = scalar_select %p713, %s21, 1
        %s715 = smul.addr %s714, 8
        %s716 = smul.addr %s715, 4
        %s717 = scalar_lea.vmem %s6, %s716
      $region64: #{tpu_custom_call.1} parent=59 // pred_fallthru
        _
      // Predicated region
      $region65: #{tpu_custom_call.1} parent=59 // pred_check
        %p718 = pneg %p201
      $region66: #{tpu_custom_call.1} parent=59 // pred_check_branch
        %720 = sbr.rel (%p718) target = $region68
      $region67: #{tpu_custom_call.1} parent=59 // pred_region
        %p721 = scmp.lt.s32.totalorder %s21, 1
        %s722 = scalar_select %p721, %s21, 1
        %s723 = smul.addr %s722, 8
        %s724 = smul.addr %s723, 4
        %s725 = scalar_lea.vmem %s7, %s724
      $region68: #{tpu_custom_call.1} parent=59 // pred_fallthru
        _
      // Predicated region
      $region69: #{tpu_custom_call.1} parent=59 // pred_check
        %p726 = pneg %p227
      $region70: #{tpu_custom_call.1} parent=59 // pred_check_branch
        %728 = sbr.rel (%p726) target = $region72
      $region71: #{tpu_custom_call.1} parent=59 // pred_region
        %p729 = scmp.lt.s32.totalorder %s21, 1
        %s730 = scalar_select %p729, %s21, 1
        %s731 = smul.addr %s730, 8
        %s732 = smul.addr %s731, 4
        %s733 = scalar_lea.vmem %s8, %s732
      $region72: #{tpu_custom_call.1} parent=59 // pred_fallthru
        _
    $region60: #{tpu_custom_call.1} parent=5 // pred_fallthru
      _
  $region6: #{tpu_custom_call.1} parent=0 // loop_footer
    %s19 = sadd.s32 1, %s15
  $region7: #{tpu_custom_call.1} parent=0 // loop_footer_branch
    %14 = sbr.rel target = $region3
  $region8: #{tpu_custom_call.1} parent=0 // loop_exit
    _

</llo_original>
